<compile_context>
chip_gen: v6e
topology: v6e:2x2x1
jax: 0.10.0
libtpu: 0.0.40
codegen_flags: <defaults>
</compile_context>

<pallas_src>
import functools

import jax
import jax.numpy as jnp
from jax.experimental import pallas as pl
from jax.experimental.pallas import tpu as pltpu


def _round_up(v: int, m: int) -> int:
    return ((v + m - 1) // m) * m


def _make_dec_kernel(alpha: float, h_pad: int):
    power = -(alpha + 1.0) / 2.0
    inv_alpha = 1.0 / alpha
    use_recip = (alpha == 1.0)

    def dec_kernel(x_ref, wg_ref, c2_ref, q_ref):
        x = x_ref[...]            # [TB, E]           (pipelined, f32 or bf16)
        wg = wg_ref[...]          # [E, Hp + Kp]      (resident fused weight)
        c2 = c2_ref[...]          # [1, Kp]  f32, ||mu - b||^2; padding = 1e30

        # ---- single wide MXU matmul (encoder + center projection fused) ----
        out = jnp.dot(x, wg, preferred_element_type=jnp.float32)  # [TB, Hp+Kp]
        y = out[:, :h_pad]        # x @ W   (padded cols are exact zeros)
        yc = out[:, h_pad:]       # x @ (W @ c^T) == y @ c^T

        # ---- squared distances: ||y||^2 + ||c||^2 - 2 y.c ----
        y2 = jnp.sum(y * y, axis=-1, keepdims=True)               # [TB, 1]
        d2 = jnp.maximum(y2 + c2 - 2.0 * yc, 0.0)                 # [TB, Kp]

        # ---- Student's t kernel ----
        base = 1.0 + d2 * inv_alpha                               # >= 1
        if use_recip:
            # power == -1: approx EUP reciprocal + one Newton-Raphson step.
            r = pl.reciprocal(base, approx=True)
            num = r * (2.0 - base * r)
        else:
            num = jnp.exp(power * jnp.log(base))
        # Padded K lanes: c2 = 1e30  =>  num ~ 1e-30 (exactly 0 after exp path),
        # so they contribute nothing to the row sum -- no mask needed.

        # ---- row-wise normalization (narrow reciprocal + broadcast mul) ----
        s = jnp.sum(num, axis=-1, keepdims=True)                  # [TB, 1]
        inv = pl.reciprocal(s, approx=True)
        inv = inv * (2.0 - s * inv)                               # 1 NR step
        q_ref[...] = num * inv

    return dec_kernel


def _dec_pallas(x_p, wg, c2, *, alpha, h_pad, k_pad, tb, vmem_limit,
                single_buffer):
    b_pad, e = x_p.shape
    resident_kwargs = (
        {"pipeline_mode": pl.Buffered(1)} if single_buffer else {})
    return pl.pallas_call(
        _make_dec_kernel(alpha, h_pad),
        out_shape=jax.ShapeDtypeStruct((b_pad, k_pad), jnp.float32),
        grid=(b_pad // tb,),
        in_specs=[
            pl.BlockSpec((tb, e), lambda i: (i, 0)),                # x tile
            pl.BlockSpec((e, h_pad + k_pad), lambda i: (0, 0),      # fused W
                         **resident_kwargs),
            pl.BlockSpec((1, k_pad), lambda i: (0, 0),              # ||c||^2
                         **resident_kwargs),
        ],
        out_specs=pl.BlockSpec((tb, k_pad), lambda i: (i, 0)),      # q tile
        compiler_params=pltpu.CompilerParams(
            dimension_semantics=("parallel",),
            vmem_limit_bytes=vmem_limit,
        ),
    )(x_p, wg, c2)


@functools.partial(
    jax.jit,
    static_argnames=("alpha", "tile_b", "compute_dtype",
                     "single_buffer_residents"))
def _dec_forward_impl(x, w, b, centers, *, alpha, tile_b, compute_dtype,
                      single_buffer_residents):
    B, E = x.shape
    Ew, H = w.shape
    K, Hc = centers.shape
    assert E == Ew and H == Hc and b.shape == (1, H)

    f32 = jnp.float32
    cdt = jnp.dtype(compute_dtype)

    # ---- weight-sized, one-pass layout prep (outside the hot loop) ----
    w32 = w.astype(f32)
    c_fold = centers.astype(f32) - b.astype(f32)            # [K, H] bias folded
    h_pad = _round_up(H, 128)
    k_pad = _round_up(K, 128)

    # Fused weight: [ W (padded to h_pad lanes) | W @ c_fold^T (padded to k_pad) ]
    g = jnp.dot(w32, c_fold.T, precision=jax.lax.Precision.HIGHEST)  # [E, K]
    wg = jnp.zeros((E, h_pad + k_pad), f32)
    wg = wg.at[:, :H].set(w32).at[:, h_pad:h_pad + K].set(g)
    wg = wg.astype(cdt)

    # ||c||^2, with padded lanes baked to a large finite value (NOT inf) so the
    # padded num lanes underflow to ~0 on both the reciprocal and exp/log paths.
    c2 = jnp.full((1, k_pad), 1e30, f32).at[0, :K].set(
        jnp.sum(c_fold * c_fold, axis=-1))

    # ---- batch tiling: largest tile under a conservative VMEM budget ----
    tb = int(min(tile_b, _round_up(B, 8)))
    tb = max(8, (tb // 8) * 8)

    def vmem_bytes(t):
        n_res = 1 if single_buffer_residents else 2
        return (2 * t * E * cdt.itemsize                 # x, double-buffered
                + 2 * t * k_pad * 4                      # q, double-buffered
                + n_res * (E * (h_pad + k_pad) * cdt.itemsize + k_pad * 4))

    budget = 36 * 1024 * 1024      # leaves headroom on v7x (64 MiB physical)
    while tb > 8 and vmem_bytes(tb) > budget:
        tb = max(8, (tb // 2 // 8) * 8)
    b_pad = _round_up(B, tb)

    # Avoid extra HBM passes over x when possible (no cast, no pad).
    x_c = x if x.dtype == cdt else x.astype(cdt)
    x_p = x_c if b_pad == B else jnp.zeros((b_pad, E), cdt).at[:B].set(x_c)

    q_pad = _dec_pallas(x_p, wg, c2, alpha=alpha, h_pad=h_pad, k_pad=k_pad,
                        tb=tb, vmem_limit=48 * 1024 * 1024,
                        single_buffer=single_buffer_residents)

    # TODO(synk): consumers that accept the padded [b_pad, k_pad] layout can
    # skip this slice (it is an extra HBM pass over q).
    return q_pad[:B, :K]


def dec_forward(x, w, b, centers, alpha: float = 1.0, tile_b: int = 512,
                compute_dtype=jnp.float32):
    try:
        return _dec_forward_impl(
            x, w, b, centers, alpha=alpha, tile_b=tile_b,
            compute_dtype=compute_dtype, single_buffer_residents=True)
    except Exception:
        # Some JAX versions may reject pl.Buffered(1) for single-buffered
        # resident operands; fall back to default double-buffered BlockSpecs.
        return _dec_forward_impl(
            x, w, b, centers, alpha=alpha, tile_b=tile_b,
            compute_dtype=compute_dtype, single_buffer_residents=False)


def dec_reference(x, w, b, centers, alpha: float = 1.0):
    z = jnp.dot(x, w, precision=jax.lax.Precision.HIGHEST) + b
    d2 = jnp.sum((z[:, None, :] - centers[None, :, :]) ** 2, axis=-1)
    num = (1.0 + d2 / alpha) ** (-(alpha + 1.0) / 2.0)
    return num / jnp.sum(num, axis=-1, keepdims=True)


if __name__ == "__main__":
    # Small deterministic shapes consistent with DEC's forward:
    #   batch=8, embedding_dim=32, hidden_dim=32, cluster_number=4, alpha=1.0
    B, E, H, K = 8, 32, 32, 4
    alpha = 1.0

    key = jax.random.PRNGKey(0)
    kx, kw, kb, kc = jax.random.split(key, 4)
    x = jax.random.normal(kx, (B, E), dtype=jnp.float32)
    w = jax.random.normal(kw, (E, H), dtype=jnp.float32) * 0.1   # encoder weight
    b = jax.random.normal(kb, (1, H), dtype=jnp.float32) * 0.1   # encoder bias
    centers = jax.random.normal(kc, (K, H), dtype=jnp.float32)   # cluster centers

    # f32 path, alpha == 1 (reciprocal fast path), single batch tile.
    q = dec_forward(x, w, b, centers, alpha=alpha)
    jax.block_until_ready(q)
    q_ref = dec_reference(x, w, b, centers, alpha)
    assert q.shape == (B, K)
    assert jnp.allclose(q, q_ref, atol=1e-4, rtol=1e-4), (
        float(jnp.max(jnp.abs(q - q_ref))))
    assert jnp.allclose(jnp.sum(q, axis=-1), 1.0, atol=1e-4)

    # General-alpha (exp/log) path + multi-step grid + ragged batch (B=20, tb=8).
    x3 = jnp.tile(x, (3, 1))[:20]
    q2 = dec_forward(x3, w, b, centers, alpha=2.0, tile_b=8)
    jax.block_until_ready(q2)
    q2_ref = dec_reference(x3, w, b, centers, 2.0)
    assert jnp.allclose(q2, q2_ref, atol=1e-4, rtol=1e-4), (
        float(jnp.max(jnp.abs(q2 - q2_ref))))

    # bf16-streamed matmul operands (f32 accumulation + f32 distance/softmax).
    q3 = dec_forward(x, w, b, centers, alpha=alpha, compute_dtype=jnp.bfloat16)
    jax.block_until_ready(q3)
    assert jnp.allclose(q3, q_ref, atol=2e-2, rtol=2e-2), (
        float(jnp.max(jnp.abs(q3 - q_ref))))

    print("KERNEL_OK")
</pallas_src>

<mosaic_0001>
module attributes {stable_mosaic.version = 11 : i64} {
  func.func @dec_kernel(%arg0: i32, %arg1: memref<8x32xf32, #tpu.memory_space<vmem>>, %arg2: memref<32x256xf32, #tpu.memory_space<vmem>>, %arg3: memref<1x128xf32, #tpu.memory_space<vmem>>, %arg4: memref<8x128xf32, #tpu.memory_space<vmem>>) attributes {dimension_semantics = [#tpu.dimension_semantics<parallel>], iteration_bounds = array<i64: 1>, scalar_prefetch = 0 : i64, scratch_operands = 0 : i64, tpu.core_type = #tpu.core_type<tc>, window_params = [{transform_indices = @transform_0, window_bounds = array<i64: 8, 32>}, {pipeline_mode = #tpu.pipeline_mode<synchronous>, transform_indices = @transform_1, window_bounds = array<i64: 32, 256>}, {pipeline_mode = #tpu.pipeline_mode<synchronous>, transform_indices = @transform_2, window_bounds = array<i64: 1, 128>}, {transform_indices = @transform_3, window_bounds = array<i64: 8, 128>}]} {
    %c0 = arith.constant 0 : index
    %c0_0 = arith.constant 0 : index
    %0 = vector.load %arg1[%c0, %c0_0] : memref<8x32xf32, #tpu.memory_space<vmem>>, vector<8x32xf32>
    %c0_1 = arith.constant 0 : index
    %c0_2 = arith.constant 0 : index
    %1 = vector.load %arg2[%c0_1, %c0_2] : memref<32x256xf32, #tpu.memory_space<vmem>>, vector<32x256xf32>
    %c0_3 = arith.constant 0 : index
    %c0_4 = arith.constant 0 : index
    %2 = vector.load %arg3[%c0_3, %c0_4] : memref<1x128xf32, #tpu.memory_space<vmem>>, vector<1x128xf32>
    %cst = arith.constant dense<0.000000e+00> : vector<8x256xf32>
    %3 = tpu.matmul %0, %1, %cst {dimension_numbers = #tpu.dot_dimension_numbers<[1], [0], [0], [1], [0, 0, 1, 1], [], []>} : vector<8x32xf32>, vector<32x256xf32>, vector<8x256xf32> -> vector<8x256xf32>
    %4 = vector.extract_strided_slice %3 {offsets = [0, 0], sizes = [8, 128], strides = [1, 1]} : vector<8x256xf32> to vector<8x128xf32>
    %5 = vector.extract_strided_slice %3 {offsets = [0, 128], sizes = [8, 128], strides = [1, 1]} : vector<8x256xf32> to vector<8x128xf32>
    %6 = arith.mulf %4, %4 : vector<8x128xf32>
    %cst_5 = arith.constant dense<0.000000e+00> : vector<8xf32>
    %7 = vector.multi_reduction <add>, %6, %cst_5 [1] : vector<8x128xf32> to vector<8xf32>
    %8 = vector.shape_cast %7 : vector<8xf32> to vector<8x1xf32>
    %9 = vector.broadcast %8 : vector<8x1xf32> to vector<8x128xf32>
    %10 = vector.broadcast %2 : vector<1x128xf32> to vector<8x128xf32>
    %11 = arith.addf %9, %10 : vector<8x128xf32>
    %cst_6 = arith.constant 2.000000e+00 : f32
    %12 = vector.broadcast %cst_6 : f32 to vector<8x128xf32>
    %13 = arith.mulf %12, %5 : vector<8x128xf32>
    %14 = arith.subf %11, %13 : vector<8x128xf32>
    %cst_7 = arith.constant 0.000000e+00 : f32
    %15 = vector.broadcast %cst_7 : f32 to vector<8x128xf32>
    %16 = arith.maximumf %14, %15 : vector<8x128xf32>
    %cst_8 = arith.constant 1.000000e+00 : f32
    %17 = vector.broadcast %cst_8 : f32 to vector<8x128xf32>
    %18 = arith.mulf %16, %17 : vector<8x128xf32>
    %cst_9 = arith.constant 1.000000e+00 : f32
    %19 = vector.broadcast %cst_9 : f32 to vector<8x128xf32>
    %20 = arith.addf %19, %18 : vector<8x128xf32>
    %21 = tpu.reciprocal %20 {approx = true} : vector<8x128xf32> -> vector<8x128xf32>
    %22 = arith.mulf %20, %21 : vector<8x128xf32>
    %cst_10 = arith.constant 2.000000e+00 : f32
    %23 = vector.broadcast %cst_10 : f32 to vector<8x128xf32>
    %24 = arith.subf %23, %22 : vector<8x128xf32>
    %25 = arith.mulf %21, %24 : vector<8x128xf32>
    %cst_11 = arith.constant dense<0.000000e+00> : vector<8xf32>
    %26 = vector.multi_reduction <add>, %25, %cst_11 [1] : vector<8x128xf32> to vector<8xf32>
    %27 = vector.shape_cast %26 : vector<8xf32> to vector<8x1xf32>
    %28 = tpu.reciprocal %27 {approx = true} : vector<8x1xf32> -> vector<8x1xf32>
    %29 = arith.mulf %27, %28 : vector<8x1xf32>
    %cst_12 = arith.constant 2.000000e+00 : f32
    %30 = vector.broadcast %cst_12 : f32 to vector<8x1xf32>
    %31 = arith.subf %30, %29 : vector<8x1xf32>
    %32 = arith.mulf %28, %31 : vector<8x1xf32>
    %33 = vector.broadcast %32 : vector<8x1xf32> to vector<8x128xf32>
    %34 = arith.mulf %25, %33 : vector<8x128xf32>
    %c0_13 = arith.constant 0 : index
    %c0_14 = arith.constant 0 : index
    %35 = vector.load %arg4[%c0_13, %c0_14] : memref<8x128xf32, #tpu.memory_space<vmem>>, vector<8x128xf32>
    tpu.vector_store %arg4[%c0_13, %c0_14], %34 {strides = array<i32>} : memref<8x128xf32, #tpu.memory_space<vmem>>, vector<8x128xf32>,
    return
  }
  func.func @transform_0(%arg0: i32) -> (i32, i32) {
    %c0_i32 = arith.constant 0 : i32
    %c0_i32_0 = arith.constant 0 : i32
    return %arg0, %c0_i32 : i32, i32
  }
  func.func @transform_1(%arg0: i32) -> (i32, i32) {
    %c0_i32 = arith.constant 0 : i32
    %c0_i32_0 = arith.constant 0 : i32
    %c0_i32_1 = arith.constant 0 : i32
    return %c0_i32, %c0_i32_0 : i32, i32
  }
  func.func @transform_2(%arg0: i32) -> (i32, i32) {
    %c0_i32 = arith.constant 0 : i32
    %c0_i32_0 = arith.constant 0 : i32
    %c0_i32_1 = arith.constant 0 : i32
    return %c0_i32, %c0_i32_0 : i32, i32
  }
  func.func @transform_3(%arg0: i32) -> (i32, i32) {
    %c0_i32 = arith.constant 0 : i32
    %c0_i32_0 = arith.constant 0 : i32
    return %arg0, %c0_i32 : i32, i32
  }
}

module attributes {stable_mosaic.version = 11 : i64} {
  func.func @dec_kernel(%arg0: i32, %arg1: memref<8x32xf32, #tpu.memory_space<vmem>>, %arg2: memref<32x256xf32, #tpu.memory_space<vmem>>, %arg3: memref<1x128xf32, #tpu.memory_space<vmem>>, %arg4: memref<8x128xf32, #tpu.memory_space<vmem>>) attributes {dimension_semantics = [#tpu.dimension_semantics<parallel>], iteration_bounds = array<i64: 1>, scalar_prefetch = 0 : i64, scratch_operands = 0 : i64, tpu.core_type = #tpu.core_type<tc>, window_params = [{transform_indices = @transform_0, window_bounds = array<i64: 8, 32>}, {pipeline_mode = #tpu.pipeline_mode<synchronous>, transform_indices = @transform_1, window_bounds = array<i64: 32, 256>}, {pipeline_mode = #tpu.pipeline_mode<synchronous>, transform_indices = @transform_2, window_bounds = array<i64: 1, 128>}, {transform_indices = @transform_3, window_bounds = array<i64: 8, 128>}]} {
    %c0 = arith.constant 0 : index
    %c0_0 = arith.constant 0 : index
    %0 = vector.load %arg1[%c0, %c0_0] : memref<8x32xf32, #tpu.memory_space<vmem>>, vector<8x32xf32>
    %c0_1 = arith.constant 0 : index
    %c0_2 = arith.constant 0 : index
    %1 = vector.load %arg2[%c0_1, %c0_2] : memref<32x256xf32, #tpu.memory_space<vmem>>, vector<32x256xf32>
    %c0_3 = arith.constant 0 : index
    %c0_4 = arith.constant 0 : index
    %2 = vector.load %arg3[%c0_3, %c0_4] : memref<1x128xf32, #tpu.memory_space<vmem>>, vector<1x128xf32>
    %cst = arith.constant dense<0.000000e+00> : vector<8x256xf32>
    %3 = tpu.matmul %0, %1, %cst {dimension_numbers = #tpu.dot_dimension_numbers<[1], [0], [0], [1], [0, 0, 1, 1], [], []>} : vector<8x32xf32>, vector<32x256xf32>, vector<8x256xf32> -> vector<8x256xf32>
    %4 = vector.extract_strided_slice %3 {offsets = [0, 0], sizes = [8, 128], strides = [1, 1]} : vector<8x256xf32> to vector<8x128xf32>
    %5 = vector.extract_strided_slice %3 {offsets = [0, 128], sizes = [8, 128], strides = [1, 1]} : vector<8x256xf32> to vector<8x128xf32>
    %6 = arith.mulf %4, %4 : vector<8x128xf32>
    %cst_5 = arith.constant dense<0.000000e+00> : vector<8xf32>
    %7 = vector.multi_reduction <add>, %6, %cst_5 [1] : vector<8x128xf32> to vector<8xf32>
    %8 = vector.shape_cast %7 : vector<8xf32> to vector<8x1xf32>
    %9 = vector.broadcast %8 : vector<8x1xf32> to vector<8x128xf32>
    %10 = vector.broadcast %2 : vector<1x128xf32> to vector<8x128xf32>
    %11 = arith.addf %9, %10 : vector<8x128xf32>
    %cst_6 = arith.constant 2.000000e+00 : f32
    %12 = vector.broadcast %cst_6 : f32 to vector<8x128xf32>
    %13 = arith.mulf %12, %5 : vector<8x128xf32>
    %14 = arith.subf %11, %13 : vector<8x128xf32>
    %cst_7 = arith.constant 0.000000e+00 : f32
    %15 = vector.broadcast %cst_7 : f32 to vector<8x128xf32>
    %16 = arith.maximumf %14, %15 : vector<8x128xf32>
    %cst_8 = arith.constant 1.000000e+00 : f32
    %17 = vector.broadcast %cst_8 : f32 to vector<8x128xf32>
    %18 = arith.mulf %16, %17 : vector<8x128xf32>
    %cst_9 = arith.constant 1.000000e+00 : f32
    %19 = vector.broadcast %cst_9 : f32 to vector<8x128xf32>
    %20 = arith.addf %19, %18 : vector<8x128xf32>
    %21 = tpu.reciprocal %20 {approx = true} : vector<8x128xf32> -> vector<8x128xf32>
    %22 = arith.mulf %20, %21 : vector<8x128xf32>
    %cst_10 = arith.constant 2.000000e+00 : f32
    %23 = vector.broadcast %cst_10 : f32 to vector<8x128xf32>
    %24 = arith.subf %23, %22 : vector<8x128xf32>
    %25 = arith.mulf %21, %24 : vector<8x128xf32>
    %cst_11 = arith.constant dense<0.000000e+00> : vector<8xf32>
    %26 = vector.multi_reduction <add>, %25, %cst_11 [1] : vector<8x128xf32> to vector<8xf32>
    %27 = vector.shape_cast %26 : vector<8xf32> to vector<8x1xf32>
    %28 = tpu.reciprocal %27 {approx = true} : vector<8x1xf32> -> vector<8x1xf32>
    %29 = arith.mulf %27, %28 : vector<8x1xf32>
    %cst_12 = arith.constant 2.000000e+00 : f32
    %30 = vector.broadcast %cst_12 : f32 to vector<8x1xf32>
    %31 = arith.subf %30, %29 : vector<8x1xf32>
    %32 = arith.mulf %28, %31 : vector<8x1xf32>
    %33 = vector.broadcast %32 : vector<8x1xf32> to vector<8x128xf32>
    %34 = arith.mulf %25, %33 : vector<8x128xf32>
    %c0_13 = arith.constant 0 : index
    %c0_14 = arith.constant 0 : index
    %35 = vector.load %arg4[%c0_13, %c0_14] : memref<8x128xf32, #tpu.memory_space<vmem>>, vector<8x128xf32>
    tpu.vector_store %arg4[%c0_13, %c0_14], %34 {strides = array<i32>} : memref<8x128xf32, #tpu.memory_space<vmem>>, vector<8x128xf32>,
    return
  }
  func.func @transform_0(%arg0: i32) -> (i32, i32) {
    %c0_i32 = arith.constant 0 : i32
    %c0_i32_0 = arith.constant 0 : i32
    return %arg0, %c0_i32 : i32, i32
  }
  func.func @transform_1(%arg0: i32) -> (i32, i32) {
    %c0_i32 = arith.constant 0 : i32
    %c0_i32_0 = arith.constant 0 : i32
    %c0_i32_1 = arith.constant 0 : i32
    return %c0_i32, %c0_i32_0 : i32, i32
  }
  func.func @transform_2(%arg0: i32) -> (i32, i32) {
    %c0_i32 = arith.constant 0 : i32
    %c0_i32_0 = arith.constant 0 : i32
    %c0_i32_1 = arith.constant 0 : i32
    return %c0_i32, %c0_i32_0 : i32, i32
  }
  func.func @transform_3(%arg0: i32) -> (i32, i32) {
    %c0_i32 = arith.constant 0 : i32
    %c0_i32_0 = arith.constant 0 : i32
    return %arg0, %c0_i32 : i32, i32
  }
}

</mosaic_0001>

<llo_original>
// kernel: _dec_forward_impl.1
$region0: #{_dec_forward_impl.1}
  #allocation0 [shape = 'u32[]', space=smem, size = 0x4, offset = 0x4, fixed_abs, tag = 'smem constant byte address 0x4 - core index']
  #allocation1 [shape = 'u32[144,128]{1,0:T(1,128)}', space=vmem, size = 0x12000, scoped, tag = 'internal scratch']
  %s0 = inlined_call_operand.vmem [shape: f32[8,32], index: 0, kind: input, shape index: {}]
  %s1 = inlined_call_operand.vmem [shape: f32[32,256], index: 1, kind: input, shape index: {}]
  %s2 = inlined_call_operand.vmem [shape: f32[1,128], index: 2, kind: input, shape index: {}]
  %s3 = inlined_call_operand.vmem [shape: f32[8,128], index: 3, kind: output, shape index: {}]
  %s4 = sld [smem:[#allocation0]]
  $region22: #{_dec_forward_impl.1} parent=0
    _
  %s6 = ssub.s32 1, %s4
  %s7 = scalar_select 0, %s6, %s4
  // Predicated region
  $region2: #{_dec_forward_impl.1} parent=0 // pred_check
    _
  $region3: #{_dec_forward_impl.1} parent=0 // pred_check_branch
    %9 = sbr.rel (0) target = $region5
  $region4: #{_dec_forward_impl.1} parent=0 // pred_region
    _
  $region5: #{_dec_forward_impl.1} parent=0 // pred_fallthru
    _
  // Predicated region
  $region6: #{_dec_forward_impl.1} parent=0 // pred_check
    _
  $region7: #{_dec_forward_impl.1} parent=0 // pred_check_branch
    %11 = sbr.rel (0) target = $region9
  $region8: #{_dec_forward_impl.1} parent=0 // pred_region
    _
  $region9: #{_dec_forward_impl.1} parent=0 // pred_fallthru
    _
  // Predicated region
  $region10: #{_dec_forward_impl.1} parent=0 // pred_check
    _
  $region11: #{_dec_forward_impl.1} parent=0 // pred_check_branch
    %13 = sbr.rel (0) target = $region13
  $region12: #{_dec_forward_impl.1} parent=0 // pred_region
    _
  $region13: #{_dec_forward_impl.1} parent=0 // pred_fallthru
    _
  %v14 = vld [vmem:[%s0] sm:$0xff]
  %v15 = vld [vmem:[%s1] sm:$0xff]
  %v16 = vld [vmem:[%s1 + $0x8] sm:$0xff]
  %v17 = vld [vmem:[%s1 + $0x10] sm:$0xff]
  %v18 = vld [vmem:[%s1 + $0x18] sm:$0xff]
  %v19 = vld [vmem:[%s1 + $0x20] sm:$0xff]
  %v20 = vld [vmem:[%s1 + $0x28] sm:$0xff]
  %v21 = vld [vmem:[%s1 + $0x30] sm:$0xff]
  %v22 = vld [vmem:[%s1 + $0x38] sm:$0xff]
  %v23 = vld [vmem:[%s2] sm:$0x1]
  %vm24 = vcmask 261120
  %v26 = vsel %vm24, %v14, 0
  %28 = vmatprep.subr.mxu0 0.0
  %29 = vmatpush1.msra.mxu0 0.0
  %30 = vmatprep.subr.mxu0 0.0
  %31 = vmatpush1.msra.mxu0 0.0
  %32 = vmatprep.subr.mxu0 0.0
  %33 = vmatpush1.msra.mxu0 0.0
  %34 = vmatprep.subr.mxu0 0.0
  %35 = vmatpush1.msra.mxu0 0.0
  %36 = vmatprep.subr.mxu0 0.0
  %37 = vmatpush1.msra.mxu0 0.0
  %38 = vmatprep.subr.mxu0 0.0
  %39 = vmatpush1.msra.mxu0 0.0
  %40 = vmatprep.subr.mxu0 0.0
  %41 = vmatpush1.msra.mxu0 0.0
  %42 = vmatprep.subr.mxu0 0.0
  %43 = vmatpush1.msra.mxu0 0.0
  %44 = vmatprep.subr.mxu0 0.0
  %45 = vmatpush1.msra.mxu0 0.0
  %46 = vmatprep.subr.mxu0 0.0
  %47 = vmatpush1.msra.mxu0 0.0
  %48 = vmatprep.subr.mxu0 0.0
  %49 = vmatpush1.msra.mxu0 0.0
  %50 = vmatprep.subr.mxu0 0.0
  %51 = vmatpush1.msra.mxu0 0.0
  %52 = vmatprep.subr.mxu0 %v22
  %53 = vmatpush1.msra.mxu0 %v21
  %54 = vmatprep.subr.mxu0 %v20
  %55 = vmatpush1.msra.mxu0 %v19
  %56 = vmatprep.subr.mxu0 %v18
  %57 = vmatpush1.msra.mxu0 %v17
  %58 = vmatprep.subr.mxu0 %v16
  %59 = vmatpush1.msra.mxu0 %v15
  %60 = vmatprep.subr.mxu0 0.0
  %61 = vmatpush2.msra.mxu0 0.0
  %62 = vmatprep.subr.mxu0 0.0
  %63 = vmatpush2.msra.mxu0 0.0
  %64 = vmatprep.subr.mxu0 0.0
  %65 = vmatpush2.msra.mxu0 0.0
  %66 = vmatprep.subr.mxu0 0.0
  %67 = vmatpush2.msra.mxu0 0.0
  %68 = vmatprep.subr.mxu0 0.0
  %69 = vmatpush2.msra.mxu0 0.0
  %70 = vmatprep.subr.mxu0 0.0
  %71 = vmatpush2.msra.mxu0 0.0
  %72 = vmatprep.subr.mxu0 0.0
  %73 = vmatpush2.msra.mxu0 0.0
  %74 = vmatprep.subr.mxu0 0.0
  %75 = vmatpush2.msra.mxu0 0.0
  %76 = vmatprep.subr.mxu0 0.0
  %77 = vmatpush2.msra.mxu0 0.0
  %78 = vmatprep.subr.mxu0 0.0
  %79 = vmatpush2.msra.mxu0 0.0
  %80 = vmatprep.subr.mxu0 0.0
  %81 = vmatpush2.msra.mxu0 0.0
  %82 = vmatprep.subr.mxu0 0.0
  %83 = vmatpush2.msra.mxu0 0.0
  %84 = vmatprep.subr.mxu0 0.0
  %85 = vmatpush2.msra.mxu0 0.0
  %86 = vmatprep.subr.mxu0 0.0
  %87 = vmatpush2.msra.mxu0 0.0
  %88 = vmatprep.subr.mxu0 0.0
  %89 = vmatpush2.msra.mxu0 0.0
  %90 = vmatprep.subr.mxu0 0.0
  %91 = vmatpush2.msra.mxu0 0.0
  %92 = vmatprep.mubr.f32.mxu0 0.0
  %93 = vmatmul.mubr.f32.gmra.mxu0 %v26
  %v94 = vpop.f32.mrf.mxu0
  %v95 = vadd.f32 0.0, %v94
  %v96 = vpop.f32.mrf.mxu0
  %v97 = vadd.f32 0.0, %v96
  %98 = vdwg.mxu0
  %v99 = vmul.f32 %v95, %v95
  %100 = vadd.xlane.f32.xlu0 %v99
  %v101 = vpop.xlane.xlu0 %100
  %v103 = vlaneseq
  %v104 = vshrl.u32 %v103, 7
  %v105 = vsub.s32 0, %v104
  %v106 = vrot.slane %v23, %v105
  %v108 = vadd.f32 %v101, %v106
  %v109 = vmul.f32 %v97, 2.0
  %v110 = vsub.f32 %v108, %v109
  %v111 = vmax.f32 %v110, 0.0
  %v112 = vadd.f32 %v111, 1.0
  %v113 = vrcp.pop %v112
  %v114 = vmul.f32 %v112, %v113
  %v115 = vsub.f32 2.0, %v114
  %v116 = vmul.f32 %v113, %v115
  %117 = vadd.xlane.f32.xlu0 %v116
  %v118 = vpop.xlane.xlu0 %117
  %v119 = vrcp.pop %v118
  %v120 = vmul.f32 %v118, %v119
  %v121 = vsub.f32 2.0, %v120
  %v122 = vmul.f32 %v119, %v121
  %v123 = vmul.f32 %v116, %v122
  %124 = vst [vmem:[%s3] sm:$0xff] %v123
  // Predicated region
  $region14: #{_dec_forward_impl.1} parent=0 // pred_check
    _
  $region15: #{_dec_forward_impl.1} parent=0 // pred_check_branch
    %126 = sbr.rel (0) target = $region17
  $region16: #{_dec_forward_impl.1} parent=0 // pred_region
    _
  $region17: #{_dec_forward_impl.1} parent=0 // pred_fallthru
    _
  // Predicated region
  $region18: #{_dec_forward_impl.1} parent=0 // pred_check
    _
  $region19: #{_dec_forward_impl.1} parent=0 // pred_check_branch
    %128 = sbr.rel (0) target = $region21
  $region20: #{_dec_forward_impl.1} parent=0 // pred_region
    _
  $region21: #{_dec_forward_impl.1} parent=0 // pred_fallthru
    _

// kernel: _dec_forward_impl.1
$region0: #{_dec_forward_impl.1}
  #allocation0 [shape = 'u32[]', space=smem, size = 0x4, offset = 0x4, fixed_abs, tag = 'smem constant byte address 0x4 - core index']
  #allocation1 [shape = 'u32[144,128]{1,0:T(1,128)}', space=vmem, size = 0x12000, scoped, tag = 'internal scratch']
  %s0 = inlined_call_operand.vmem [shape: f32[8,32], index: 0, kind: input, shape index: {}]
  %s1 = inlined_call_operand.vmem [shape: f32[32,256], index: 1, kind: input, shape index: {}]
  %s2 = inlined_call_operand.vmem [shape: f32[1,128], index: 2, kind: input, shape index: {}]
  %s3 = inlined_call_operand.vmem [shape: f32[8,128], index: 3, kind: output, shape index: {}]
  %s4 = sld [smem:[#allocation0]]
  $region22: #{_dec_forward_impl.1} parent=0
    _
  %s6 = ssub.s32 1, %s4
  %s7 = scalar_select 0, %s6, %s4
  // Predicated region
  $region2: #{_dec_forward_impl.1} parent=0 // pred_check
    _
  $region3: #{_dec_forward_impl.1} parent=0 // pred_check_branch
    %9 = sbr.rel (0) target = $region5
  $region4: #{_dec_forward_impl.1} parent=0 // pred_region
    _
  $region5: #{_dec_forward_impl.1} parent=0 // pred_fallthru
    _
  // Predicated region
  $region6: #{_dec_forward_impl.1} parent=0 // pred_check
    _
  $region7: #{_dec_forward_impl.1} parent=0 // pred_check_branch
    %11 = sbr.rel (0) target = $region9
  $region8: #{_dec_forward_impl.1} parent=0 // pred_region
    _
  $region9: #{_dec_forward_impl.1} parent=0 // pred_fallthru
    _
  // Predicated region
  $region10: #{_dec_forward_impl.1} parent=0 // pred_check
    _
  $region11: #{_dec_forward_impl.1} parent=0 // pred_check_branch
    %13 = sbr.rel (0) target = $region13
  $region12: #{_dec_forward_impl.1} parent=0 // pred_region
    _
  $region13: #{_dec_forward_impl.1} parent=0 // pred_fallthru
    _
  %v14 = vld [vmem:[%s0] sm:$0xff]
  %v15 = vld [vmem:[%s1] sm:$0xff]
  %v16 = vld [vmem:[%s1 + $0x8] sm:$0xff]
  %v17 = vld [vmem:[%s1 + $0x10] sm:$0xff]
  %v18 = vld [vmem:[%s1 + $0x18] sm:$0xff]
  %v19 = vld [vmem:[%s1 + $0x20] sm:$0xff]
  %v20 = vld [vmem:[%s1 + $0x28] sm:$0xff]
  %v21 = vld [vmem:[%s1 + $0x30] sm:$0xff]
  %v22 = vld [vmem:[%s1 + $0x38] sm:$0xff]
  %v23 = vld [vmem:[%s2] sm:$0x1]
  %vm24 = vcmask 261120
  %v26 = vsel %vm24, %v14, 0
  %28 = vmatprep.subr.mxu0 0.0
  %29 = vmatpush1.msra.mxu0 0.0
  %30 = vmatprep.subr.mxu0 0.0
  %31 = vmatpush1.msra.mxu0 0.0
  %32 = vmatprep.subr.mxu0 0.0
  %33 = vmatpush1.msra.mxu0 0.0
  %34 = vmatprep.subr.mxu0 0.0
  %35 = vmatpush1.msra.mxu0 0.0
  %36 = vmatprep.subr.mxu0 0.0
  %37 = vmatpush1.msra.mxu0 0.0
  %38 = vmatprep.subr.mxu0 0.0
  %39 = vmatpush1.msra.mxu0 0.0
  %40 = vmatprep.subr.mxu0 0.0
  %41 = vmatpush1.msra.mxu0 0.0
  %42 = vmatprep.subr.mxu0 0.0
  %43 = vmatpush1.msra.mxu0 0.0
  %44 = vmatprep.subr.mxu0 0.0
  %45 = vmatpush1.msra.mxu0 0.0
  %46 = vmatprep.subr.mxu0 0.0
  %47 = vmatpush1.msra.mxu0 0.0
  %48 = vmatprep.subr.mxu0 0.0
  %49 = vmatpush1.msra.mxu0 0.0
  %50 = vmatprep.subr.mxu0 0.0
  %51 = vmatpush1.msra.mxu0 0.0
  %52 = vmatprep.subr.mxu0 %v22
  %53 = vmatpush1.msra.mxu0 %v21
  %54 = vmatprep.subr.mxu0 %v20
  %55 = vmatpush1.msra.mxu0 %v19
  %56 = vmatprep.subr.mxu0 %v18
  %57 = vmatpush1.msra.mxu0 %v17
  %58 = vmatprep.subr.mxu0 %v16
  %59 = vmatpush1.msra.mxu0 %v15
  %60 = vmatprep.subr.mxu0 0.0
  %61 = vmatpush2.msra.mxu0 0.0
  %62 = vmatprep.subr.mxu0 0.0
  %63 = vmatpush2.msra.mxu0 0.0
  %64 = vmatprep.subr.mxu0 0.0
  %65 = vmatpush2.msra.mxu0 0.0
  %66 = vmatprep.subr.mxu0 0.0
  %67 = vmatpush2.msra.mxu0 0.0
  %68 = vmatprep.subr.mxu0 0.0
  %69 = vmatpush2.msra.mxu0 0.0
  %70 = vmatprep.subr.mxu0 0.0
  %71 = vmatpush2.msra.mxu0 0.0
  %72 = vmatprep.subr.mxu0 0.0
  %73 = vmatpush2.msra.mxu0 0.0
  %74 = vmatprep.subr.mxu0 0.0
  %75 = vmatpush2.msra.mxu0 0.0
  %76 = vmatprep.subr.mxu0 0.0
  %77 = vmatpush2.msra.mxu0 0.0
  %78 = vmatprep.subr.mxu0 0.0
  %79 = vmatpush2.msra.mxu0 0.0
  %80 = vmatprep.subr.mxu0 0.0
  %81 = vmatpush2.msra.mxu0 0.0
  %82 = vmatprep.subr.mxu0 0.0
  %83 = vmatpush2.msra.mxu0 0.0
  %84 = vmatprep.subr.mxu0 0.0
  %85 = vmatpush2.msra.mxu0 0.0
  %86 = vmatprep.subr.mxu0 0.0
  %87 = vmatpush2.msra.mxu0 0.0
  %88 = vmatprep.subr.mxu0 0.0
  %89 = vmatpush2.msra.mxu0 0.0
  %90 = vmatprep.subr.mxu0 0.0
  %91 = vmatpush2.msra.mxu0 0.0
  %92 = vmatprep.mubr.f32.mxu0 0.0
  %93 = vmatmul.mubr.f32.gmra.mxu0 %v26
  %v94 = vpop.f32.mrf.mxu0
  %v95 = vadd.f32 0.0, %v94
  %v96 = vpop.f32.mrf.mxu0
  %v97 = vadd.f32 0.0, %v96
  %98 = vdwg.mxu0
  %v99 = vmul.f32 %v95, %v95
  %100 = vadd.xlane.f32.xlu0 %v99
  %v101 = vpop.xlane.xlu0 %100
  %v103 = vlaneseq
  %v104 = vshrl.u32 %v103, 7
  %v105 = vsub.s32 0, %v104
  %v106 = vrot.slane %v23, %v105
  %v108 = vadd.f32 %v101, %v106
  %v109 = vmul.f32 %v97, 2.0
  %v110 = vsub.f32 %v108, %v109
  %v111 = vmax.f32 %v110, 0.0
  %v112 = vadd.f32 %v111, 1.0
  %v113 = vrcp.pop %v112
  %v114 = vmul.f32 %v112, %v113
  %v115 = vsub.f32 2.0, %v114
  %v116 = vmul.f32 %v113, %v115
  %117 = vadd.xlane.f32.xlu0 %v116
  %v118 = vpop.xlane.xlu0 %117
  %v119 = vrcp.pop %v118
  %v120 = vmul.f32 %v118, %v119
  %v121 = vsub.f32 2.0, %v120
  %v122 = vmul.f32 %v119, %v121
  %v123 = vmul.f32 %v116, %v122
  %124 = vst [vmem:[%s3] sm:$0xff] %v123
  // Predicated region
  $region14: #{_dec_forward_impl.1} parent=0 // pred_check
    _
  $region15: #{_dec_forward_impl.1} parent=0 // pred_check_branch
    %126 = sbr.rel (0) target = $region17
  $region16: #{_dec_forward_impl.1} parent=0 // pred_region
    _
  $region17: #{_dec_forward_impl.1} parent=0 // pred_fallthru
    _
  // Predicated region
  $region18: #{_dec_forward_impl.1} parent=0 // pred_check
    _
  $region19: #{_dec_forward_impl.1} parent=0 // pred_check_branch
    %128 = sbr.rel (0) target = $region21
  $region20: #{_dec_forward_impl.1} parent=0 // pred_region
    _
  $region21: #{_dec_forward_impl.1} parent=0 // pred_fallthru
    _

</llo_original>
